<compile_context>
chip_gen: v5e
topology: v5e:2x2
jax: 0.10.0
libtpu: 0.0.40
codegen_flags: <defaults>
</compile_context>

<pallas_src>
import jax
import jax.numpy as jnp
from jax.experimental import pallas as pl
from jax.experimental.pallas import tpu as pltpu

VMEM = pltpu.MemorySpace.VMEM

HIDDEN = 16
OUT = 300
OUT_PAD = 384          # next multiple of 128 -> lane-dense stores
NEG = -1e9             # bias for the 84 pad classes (killed by softmax)


# ---------------------------------------------------------------------------
# Static graph schema helpers
# ---------------------------------------------------------------------------
def _schema(node_dims, edge_types):
    node_types = sorted(node_dims)
    edge_types = sorted(edge_types)
    ets_of = {nt: [et for et in edge_types if et[2] == nt] for nt in node_types}
    for nt in node_types:
        # Pre-summing lin_r / bias per destination type is only valid because
        # every node type receives >= 1 edge type and the edge-type
        # aggregation is "sum" -- keep this assert if the schema changes.
        assert ets_of[nt], f"no incoming edge type for node type {nt!r}"
    return node_types, edge_types, ets_of


# ---------------------------------------------------------------------------
# Fused forward: one pallas_call for the entire heterogeneous GNN
# ---------------------------------------------------------------------------
def make_fused_forward(node_dims, edge_types, hidden=HIDDEN, out=OUT,
                       out_pad=OUT_PAD):
    node_types, edge_types, ets_of = _schema(node_dims, edge_types)
    nrows = {nt: node_dims[nt][0] for nt in node_types}
    feat = {nt: node_dims[nt][1] for nt in node_types}

    # Static column layout of the per-destination packed activation buffer Z:
    #   [ agg(et_1) | agg(et_2) | ... | root activation ]
    def z_layout(width_of):
        blocks, total = {}, {}
        for nt in node_types:
            col, blk = 0, []
            for et in ets_of[nt]:
                blk.append((et, col, width_of(et[0])))
                col += width_of(et[0])
            blocks[nt] = (blk, col)            # (edge blocks, root column)
            total[nt] = col + width_of(nt)
        return blocks, total

    blocks0, k0 = z_layout(lambda s: feat[s])   # layer 0 widths = input feats
    blocks1, k1 = z_layout(lambda s: hidden)    # layer 1 widths = hidden

    def kernel(*refs):
        it = iter(refs)
        x = {nt: next(it)[...] for nt in node_types}       # bf16 node features
        adj = {et: next(it)[...] for et in edge_types}     # bf16 mean adjacency
        w0 = {nt: next(it) for nt in node_types}            # bf16 stacked W
        b0 = {nt: next(it) for nt in node_types}            # f32 bias
        w1 = {nt: next(it) for nt in node_types}
        b1 = {nt: next(it) for nt in node_types}
        o = {nt: next(it) for nt in node_types}              # f32 (n, 384) out
        z0 = {nt: next(it) for nt in node_types}             # bf16 scratch
        z1 = {nt: next(it) for nt in node_types}

        def sage_layer(act, z_refs, w_refs, b_refs, blocks):
            """One hetero SAGE layer.  Per destination type: pack the
            per-edge-type mean aggregations + the root activation into Z, then
            a SINGLE stacked-weight matmul (all lin_l blocks + summed lin_r
            fused) plus the pre-summed bias."""
            y = {}
            for nt in node_types:
                z = z_refs[nt]
                blk, root_col = blocks[nt]
                for et, col, width in blk:
                    # mean aggregation: (n_dst, n_src) @ (n_src, feat) -- cheap
                    agg = jnp.dot(adj[et], act[et[0]],
                                  preferred_element_type=jnp.float32)
                    z[:, col:col + width] = agg.astype(jnp.bfloat16)
                root = act[nt]
                z[:, root_col:root_col + root.shape[-1]] = root
                # one deep-K, lane-dense matmul per destination node type
                y[nt] = jnp.dot(z[...], w_refs[nt][...],
                                preferred_element_type=jnp.float32) \
                        + b_refs[nt][...]
            return y

        # layer 0: SAGEConv -> hidden, "sum" edge-type aggregation, ReLU
        h_pre = sage_layer(x, z0, w0, b0, blocks0)
        h = {nt: jnp.maximum(v, 0.0).astype(jnp.bfloat16)
             for nt, v in h_pre.items()}

        # conv_out: SAGEConv -> out (padded to 384), "sum" aggr, log_softmax
        logits = sage_layer(h, z1, w1, b1, blocks1)
        for nt in node_types:
            zl = logits[nt]                      # f32; pad lanes sit at ~-1e9
            m = jnp.max(zl, axis=-1, keepdims=True)
            s = zl - m
            lse = jnp.log(jnp.sum(jnp.exp(s), axis=-1, keepdims=True))
            o[nt][...] = s - lse                 # lane-dense (n, 384) store

    def forward(x_dict, adj_dict, packed):
        args = ([x_dict[nt].astype(jnp.bfloat16) for nt in node_types]
                + [adj_dict[et].astype(jnp.bfloat16) for et in edge_types]
                + [packed["w0"][nt] for nt in node_types]
                + [packed["b0"][nt] for nt in node_types]
                + [packed["w1"][nt] for nt in node_types]
                + [packed["b1"][nt] for nt in node_types])
        out_shapes = tuple(
            jax.ShapeDtypeStruct((nrows[nt], out_pad), jnp.float32)
            for nt in node_types)
        scratch = ([pltpu.VMEM((nrows[nt], k0[nt]), jnp.bfloat16)
                    for nt in node_types]
                   + [pltpu.VMEM((nrows[nt], k1[nt]), jnp.bfloat16)
                      for nt in node_types])
        res = pl.pallas_call(
            kernel,
            out_shape=out_shapes,
            in_specs=[pl.BlockSpec(memory_space=VMEM)] * len(args),
            out_specs=tuple(pl.BlockSpec(memory_space=VMEM)
                            for _ in node_types),
            scratch_shapes=scratch,
        )(*args)
        # drop the 84 pad classes (their logits were driven to ~-1e9)
        return [{nt: r[:, :out] for nt, r in zip(node_types, res)}]

    return forward


# ---------------------------------------------------------------------------
# Parameters: raw per-edge-type SAGEConv params (as to_hetero duplicates them)
# and the packed per-destination layout consumed by the fused kernel.
# ---------------------------------------------------------------------------
def _linear_init(key, fan_in, fan_out):
    return jax.random.normal(key, (fan_in, fan_out), jnp.float32) / jnp.sqrt(
        jnp.float32(fan_in))


def make_sage_params(key, in_src, in_dst, out_dim):
    k1, k2, k3 = jax.random.split(key, 3)
    return {
        "wl": _linear_init(k1, in_src, out_dim),                  # lin_l (w/ bias)
        "b": 0.01 * jax.random.normal(k3, (out_dim,), jnp.float32),
        "wr": _linear_init(k2, in_dst, out_dim),                  # lin_r (no bias)
    }


def pack_params(raw, node_dims, edge_types, hidden=HIDDEN, out=OUT,
                out_pad=OUT_PAD):
    """Per destination node type, row-stack [wl(et_1); ...; wl(et_k); sum(wr)]
    (valid because the edge-type aggregation is 'sum'), pad layer-1 columns
    300->384 with zero weights and a -1e9 bias, cast weights to bf16."""
    node_types, edge_types, ets_of = _schema(node_dims, edge_types)

    def pad_cols(w, width):
        return jnp.pad(w, ((0, 0), (0, width - w.shape[1])))

    def one_layer(lp, width_raw, width_pad, pad_bias):
        w_pack, b_pack = {}, {}
        for nt in node_types:
            ets = ets_of[nt]
            blocks = [pad_cols(lp[et]["wl"], width_pad) for et in ets]
            wr_sum = sum(lp[et]["wr"] for et in ets)
            blocks.append(pad_cols(wr_sum, width_pad))
            w_pack[nt] = jnp.concatenate(blocks, axis=0).astype(jnp.bfloat16)
            b_sum = sum(lp[et]["b"] for et in ets)
            if pad_bias:
                b_sum = jnp.concatenate(
                    [b_sum, jnp.full((width_pad - width_raw,), NEG, jnp.float32)])
            b_pack[nt] = b_sum.reshape(1, -1).astype(jnp.float32)
        return w_pack, b_pack

    w0, b0 = one_layer(raw["layer0"], hidden, hidden, pad_bias=False)
    w1, b1 = one_layer(raw["layer_out"], out, out_pad, pad_bias=True)
    return {"w0": w0, "b0": b0, "w1": w1, "b1": b1}


# ---------------------------------------------------------------------------
# Graph glue + pure-JAX f32 reference (unfused, per-edge-type formulation)
# ---------------------------------------------------------------------------
def mean_adjacency(edge_index, n_src, n_dst):
    src, dst = edge_index[0], edge_index[1]
    a = jnp.zeros((n_dst, n_src), jnp.float32).at[dst, src].add(1.0)
    deg = a.sum(axis=1, keepdims=True)
    return a / jnp.where(deg > 0.0, deg, 1.0)


def reference_forward(x_dict, adj_dict, raw_params, edge_types):
    def layer(act, layer_params, relu):
        contrib = {nt: None for nt in act}
        for et in edge_types:
            s, _, d = et
            p = layer_params[et]
            y = (adj_dict[et] @ act[s]) @ p["wl"] + p["b"][None, :] \
                + act[d] @ p["wr"]
            contrib[d] = y if contrib[d] is None else contrib[d] + y
        if relu:
            contrib = {nt: jnp.maximum(v, 0.0) for nt, v in contrib.items()}
        return contrib

    h = layer(x_dict, raw_params["layer0"], relu=True)
    o = layer(h, raw_params["layer_out"], relu=False)
    return {nt: jax.nn.log_softmax(v, axis=1) for nt, v in o.items()}


# ---------------------------------------------------------------------------
if __name__ == "__main__":
    # node types / feature dims
    N_A, F_A = 8, 32     # 'author'
    N_P, F_P = 12, 24    # 'paper'
    node_dims = {"author": (N_A, F_A), "paper": (N_P, F_P)}

    edge_types = [
        ("author", "writes", "paper"),
        ("paper", "rev_writes", "author"),
        ("paper", "cites", "paper"),
    ]

    key = jax.random.PRNGKey(0)
    keys = jax.random.split(key, 16)

    x_dict = {
        "author": jax.random.normal(keys[0], (N_A, F_A), jnp.float32),
        "paper": jax.random.normal(keys[1], (N_P, F_P), jnp.float32),
    }

    def rand_edges(k, n_src, n_dst, n_e):
        ks, kd = jax.random.split(k)
        return jnp.stack([
            jax.random.randint(ks, (n_e,), 0, n_src, jnp.int32),
            jax.random.randint(kd, (n_e,), 0, n_dst, jnp.int32),
        ])

    edge_index_dict = {
        ("author", "writes", "paper"): rand_edges(keys[2], N_A, N_P, 24),
        ("paper", "rev_writes", "author"): rand_edges(keys[3], N_P, N_A, 24),
        ("paper", "cites", "paper"): rand_edges(keys[4], N_P, N_P, 18),
    }

    adj_dict = {
        et: mean_adjacency(ei, node_dims[et[0]][0], node_dims[et[2]][0])
        for et, ei in edge_index_dict.items()
    }

    # per-edge-type SAGEConv params (to_hetero duplicates weights per edge type)
    raw_params = {"layer0": {}, "layer_out": {}}
    pkeys = jax.random.split(keys[5], 2 * len(edge_types))
    for i, et in enumerate(edge_types):
        in_src = node_dims[et[0]][1]
        in_dst = node_dims[et[2]][1]
        raw_params["layer0"][et] = make_sage_params(pkeys[2 * i], in_src,
                                                    in_dst, HIDDEN)
        raw_params["layer_out"][et] = make_sage_params(pkeys[2 * i + 1],
                                                       HIDDEN, HIDDEN, OUT)

    packed = pack_params(raw_params, node_dims, edge_types)
    forward = make_fused_forward(node_dims, edge_types)

    out = forward(x_dict, adj_dict, packed)
    out = jax.block_until_ready(out)

    # sanity checks: shapes, rows sum to 1 in prob space (f32 log_softmax),
    # and agreement with the unfused f32 per-edge-type reference (tolerance
    # loosened because matmul operands run in bf16 on the MXU).
    assert out[0]["author"].shape == (N_A, OUT)
    assert out[0]["paper"].shape == (N_P, OUT)
    ref = reference_forward(x_dict, adj_dict, raw_params, edge_types)
    for nt in ("author", "paper"):
        probs = jnp.exp(out[0][nt]).sum(axis=1)
        assert jnp.allclose(probs, 1.0, atol=1e-3)
        err = float(jnp.max(jnp.abs(out[0][nt] - ref[nt])))
        assert jnp.allclose(out[0][nt], ref[nt], atol=5e-2, rtol=5e-2), (nt, err)

    print("KERNEL_OK")
</pallas_src>

<mosaic_0001>
module attributes {stable_mosaic.version = 11 : i64} {
  func.func @kernel(%arg0: memref<8x32xbf16, #tpu.memory_space<vmem>>, %arg1: memref<12x24xbf16, #tpu.memory_space<vmem>>, %arg2: memref<12x8xbf16, #tpu.memory_space<vmem>>, %arg3: memref<12x12xbf16, #tpu.memory_space<vmem>>, %arg4: memref<8x12xbf16, #tpu.memory_space<vmem>>, %arg5: memref<56x16xbf16, #tpu.memory_space<vmem>>, %arg6: memref<80x16xbf16, #tpu.memory_space<vmem>>, %arg7: memref<1x16xf32, #tpu.memory_space<vmem>>, %arg8: memref<1x16xf32, #tpu.memory_space<vmem>>, %arg9: memref<32x384xbf16, #tpu.memory_space<vmem>>, %arg10: memref<48x384xbf16, #tpu.memory_space<vmem>>, %arg11: memref<1x384xf32, #tpu.memory_space<vmem>>, %arg12: memref<1x384xf32, #tpu.memory_space<vmem>>, %arg13: memref<8x384xf32, #tpu.memory_space<vmem>>, %arg14: memref<12x384xf32, #tpu.memory_space<vmem>>, %arg15: memref<8x56xbf16, #tpu.memory_space<vmem>>, %arg16: memref<12x80xbf16, #tpu.memory_space<vmem>>, %arg17: memref<8x32xbf16, #tpu.memory_space<vmem>>, %arg18: memref<12x48xbf16, #tpu.memory_space<vmem>>) attributes {dimension_semantics = [], scalar_prefetch = 0 : i64, scratch_operands = 4 : i64, tpu.core_type = #tpu.core_type<tc>} {
    %c0 = arith.constant 0 : index
    %c0_0 = arith.constant 0 : index
    %0 = vector.load %arg0[%c0, %c0_0] : memref<8x32xbf16, #tpu.memory_space<vmem>>, vector<8x32xbf16>
    %c0_1 = arith.constant 0 : index
    %c0_2 = arith.constant 0 : index
    %1 = vector.load %arg1[%c0_1, %c0_2] : memref<12x24xbf16, #tpu.memory_space<vmem>>, vector<12x24xbf16>
    %c0_3 = arith.constant 0 : index
    %c0_4 = arith.constant 0 : index
    %2 = vector.load %arg2[%c0_3, %c0_4] : memref<12x8xbf16, #tpu.memory_space<vmem>>, vector<12x8xbf16>
    %c0_5 = arith.constant 0 : index
    %c0_6 = arith.constant 0 : index
    %3 = vector.load %arg3[%c0_5, %c0_6] : memref<12x12xbf16, #tpu.memory_space<vmem>>, vector<12x12xbf16>
    %c0_7 = arith.constant 0 : index
    %c0_8 = arith.constant 0 : index
    %4 = vector.load %arg4[%c0_7, %c0_8] : memref<8x12xbf16, #tpu.memory_space<vmem>>, vector<8x12xbf16>
    %cst = arith.constant dense<0.000000e+00> : vector<8x24xf32>
    %5 = tpu.matmul %4, %1, %cst {dimension_numbers = #tpu.dot_dimension_numbers<[1], [0], [0], [1], [0, 0, 1, 1], [], []>} : vector<8x12xbf16>, vector<12x24xbf16>, vector<8x24xf32> -> vector<8x24xf32>
    %6 = arith.truncf %5 : vector<8x24xf32> to vector<8x24xbf16>
    %c0_9 = arith.constant 0 : index
    %c0_10 = arith.constant 0 : index
    %7 = vector.load %arg15[%c0_9, %c0_10] : memref<8x56xbf16, #tpu.memory_space<vmem>>, vector<8x24xbf16>
    tpu.vector_store %arg15[%c0_9, %c0_10], %6 {strides = array<i32>} : memref<8x56xbf16, #tpu.memory_space<vmem>>, vector<8x24xbf16>,
    %c0_11 = arith.constant 0 : index
    %c24 = arith.constant 24 : index
    %8 = vector.load %arg15[%c0_11, %c24] : memref<8x56xbf16, #tpu.memory_space<vmem>>, vector<8x32xbf16>
    tpu.vector_store %arg15[%c0_11, %c24], %0 {strides = array<i32>} : memref<8x56xbf16, #tpu.memory_space<vmem>>, vector<8x32xbf16>,
    %c0_12 = arith.constant 0 : index
    %c0_13 = arith.constant 0 : index
    %9 = vector.load %arg15[%c0_12, %c0_13] : memref<8x56xbf16, #tpu.memory_space<vmem>>, vector<8x56xbf16>
    %c0_14 = arith.constant 0 : index
    %c0_15 = arith.constant 0 : index
    %10 = vector.load %arg5[%c0_14, %c0_15] : memref<56x16xbf16, #tpu.memory_space<vmem>>, vector<56x16xbf16>
    %cst_16 = arith.constant dense<0.000000e+00> : vector<8x16xf32>
    %11 = tpu.matmul %9, %10, %cst_16 {dimension_numbers = #tpu.dot_dimension_numbers<[1], [0], [0], [1], [0, 0, 1, 1], [], []>} : vector<8x56xbf16>, vector<56x16xbf16>, vector<8x16xf32> -> vector<8x16xf32>
    %c0_17 = arith.constant 0 : index
    %c0_18 = arith.constant 0 : index
    %12 = vector.load %arg7[%c0_17, %c0_18] : memref<1x16xf32, #tpu.memory_space<vmem>>, vector<1x16xf32>
    %13 = vector.broadcast %12 : vector<1x16xf32> to vector<8x16xf32>
    %14 = arith.addf %11, %13 : vector<8x16xf32>
    %cst_19 = arith.constant dense<0.000000e+00> : vector<12x32xf32>
    %15 = tpu.matmul %2, %0, %cst_19 {dimension_numbers = #tpu.dot_dimension_numbers<[1], [0], [0], [1], [0, 0, 1, 1], [], []>} : vector<12x8xbf16>, vector<8x32xbf16>, vector<12x32xf32> -> vector<12x32xf32>
    %16 = arith.truncf %15 : vector<12x32xf32> to vector<12x32xbf16>
    %c0_20 = arith.constant 0 : index
    %c0_21 = arith.constant 0 : index
    %17 = vector.load %arg16[%c0_20, %c0_21] : memref<12x80xbf16, #tpu.memory_space<vmem>>, vector<12x32xbf16>
    tpu.vector_store %arg16[%c0_20, %c0_21], %16 {strides = array<i32>} : memref<12x80xbf16, #tpu.memory_space<vmem>>, vector<12x32xbf16>,
    %cst_22 = arith.constant dense<0.000000e+00> : vector<12x24xf32>
    %18 = tpu.matmul %3, %1, %cst_22 {dimension_numbers = #tpu.dot_dimension_numbers<[1], [0], [0], [1], [0, 0, 1, 1], [], []>} : vector<12x12xbf16>, vector<12x24xbf16>, vector<12x24xf32> -> vector<12x24xf32>
    %19 = arith.truncf %18 : vector<12x24xf32> to vector<12x24xbf16>
    %c0_23 = arith.constant 0 : index
    %c32 = arith.constant 32 : index
    %20 = vector.load %arg16[%c0_23, %c32] : memref<12x80xbf16, #tpu.memory_space<vmem>>, vector<12x24xbf16>
    tpu.vector_store %arg16[%c0_23, %c32], %19 {strides = array<i32>} : memref<12x80xbf16, #tpu.memory_space<vmem>>, vector<12x24xbf16>,
    %c0_24 = arith.constant 0 : index
    %c56 = arith.constant 56 : index
    %21 = vector.load %arg16[%c0_24, %c56] : memref<12x80xbf16, #tpu.memory_space<vmem>>, vector<12x24xbf16>
    tpu.vector_store %arg16[%c0_24, %c56], %1 {strides = array<i32>} : memref<12x80xbf16, #tpu.memory_space<vmem>>, vector<12x24xbf16>,
    %c0_25 = arith.constant 0 : index
    %c0_26 = arith.constant 0 : index
    %22 = vector.load %arg16[%c0_25, %c0_26] : memref<12x80xbf16, #tpu.memory_space<vmem>>, vector<12x80xbf16>
    %c0_27 = arith.constant 0 : index
    %c0_28 = arith.constant 0 : index
    %23 = vector.load %arg6[%c0_27, %c0_28] : memref<80x16xbf16, #tpu.memory_space<vmem>>, vector<80x16xbf16>
    %cst_29 = arith.constant dense<0.000000e+00> : vector<12x16xf32>
    %24 = tpu.matmul %22, %23, %cst_29 {dimension_numbers = #tpu.dot_dimension_numbers<[1], [0], [0], [1], [0, 0, 1, 1], [], []>} : vector<12x80xbf16>, vector<80x16xbf16>, vector<12x16xf32> -> vector<12x16xf32>
    %c0_30 = arith.constant 0 : index
    %c0_31 = arith.constant 0 : index
    %25 = vector.load %arg8[%c0_30, %c0_31] : memref<1x16xf32, #tpu.memory_space<vmem>>, vector<1x16xf32>
    %26 = vector.broadcast %25 : vector<1x16xf32> to vector<12x16xf32>
    %27 = arith.addf %24, %26 : vector<12x16xf32>
    %cst_32 = arith.constant 0.000000e+00 : f32
    %28 = vector.broadcast %cst_32 : f32 to vector<8x16xf32>
    %29 = arith.maximumf %14, %28 : vector<8x16xf32>
    %30 = arith.truncf %29 : vector<8x16xf32> to vector<8x16xbf16>
    %cst_33 = arith.constant 0.000000e+00 : f32
    %31 = vector.broadcast %cst_33 : f32 to vector<12x16xf32>
    %32 = arith.maximumf %27, %31 : vector<12x16xf32>
    %33 = arith.truncf %32 : vector<12x16xf32> to vector<12x16xbf16>
    %cst_34 = arith.constant dense<0.000000e+00> : vector<8x16xf32>
    %34 = tpu.matmul %4, %33, %cst_34 {dimension_numbers = #tpu.dot_dimension_numbers<[1], [0], [0], [1], [0, 0, 1, 1], [], []>} : vector<8x12xbf16>, vector<12x16xbf16>, vector<8x16xf32> -> vector<8x16xf32>
    %35 = arith.truncf %34 : vector<8x16xf32> to vector<8x16xbf16>
    %c0_35 = arith.constant 0 : index
    %c0_36 = arith.constant 0 : index
    %36 = vector.load %arg17[%c0_35, %c0_36] : memref<8x32xbf16, #tpu.memory_space<vmem>>, vector<8x16xbf16>
    tpu.vector_store %arg17[%c0_35, %c0_36], %35 {strides = array<i32>} : memref<8x32xbf16, #tpu.memory_space<vmem>>, vector<8x16xbf16>,
    %c0_37 = arith.constant 0 : index
    %c16 = arith.constant 16 : index
    %37 = vector.load %arg17[%c0_37, %c16] : memref<8x32xbf16, #tpu.memory_space<vmem>>, vector<8x16xbf16>
    tpu.vector_store %arg17[%c0_37, %c16], %30 {strides = array<i32>} : memref<8x32xbf16, #tpu.memory_space<vmem>>, vector<8x16xbf16>,
    %c0_38 = arith.constant 0 : index
    %c0_39 = arith.constant 0 : index
    %38 = vector.load %arg17[%c0_38, %c0_39] : memref<8x32xbf16, #tpu.memory_space<vmem>>, vector<8x32xbf16>
    %c0_40 = arith.constant 0 : index
    %c0_41 = arith.constant 0 : index
    %39 = vector.load %arg9[%c0_40, %c0_41] : memref<32x384xbf16, #tpu.memory_space<vmem>>, vector<32x384xbf16>
    %cst_42 = arith.constant dense<0.000000e+00> : vector<8x384xf32>
    %40 = tpu.matmul %38, %39, %cst_42 {dimension_numbers = #tpu.dot_dimension_numbers<[1], [0], [0], [1], [0, 0, 1, 1], [], []>} : vector<8x32xbf16>, vector<32x384xbf16>, vector<8x384xf32> -> vector<8x384xf32>
    %c0_43 = arith.constant 0 : index
    %c0_44 = arith.constant 0 : index
    %41 = vector.load %arg11[%c0_43, %c0_44] : memref<1x384xf32, #tpu.memory_space<vmem>>, vector<1x384xf32>
    %42 = vector.broadcast %41 : vector<1x384xf32> to vector<8x384xf32>
    %43 = arith.addf %40, %42 : vector<8x384xf32>
    %cst_45 = arith.constant dense<0.000000e+00> : vector<12x16xf32>
    %44 = tpu.matmul %2, %30, %cst_45 {dimension_numbers = #tpu.dot_dimension_numbers<[1], [0], [0], [1], [0, 0, 1, 1], [], []>} : vector<12x8xbf16>, vector<8x16xbf16>, vector<12x16xf32> -> vector<12x16xf32>
    %45 = arith.truncf %44 : vector<12x16xf32> to vector<12x16xbf16>
    %c0_46 = arith.constant 0 : index
    %c0_47 = arith.constant 0 : index
    %46 = vector.load %arg18[%c0_46, %c0_47] : memref<12x48xbf16, #tpu.memory_space<vmem>>, vector<12x16xbf16>
    tpu.vector_store %arg18[%c0_46, %c0_47], %45 {strides = array<i32>} : memref<12x48xbf16, #tpu.memory_space<vmem>>, vector<12x16xbf16>,
    %cst_48 = arith.constant dense<0.000000e+00> : vector<12x16xf32>
    %47 = tpu.matmul %3, %33, %cst_48 {dimension_numbers = #tpu.dot_dimension_numbers<[1], [0], [0], [1], [0, 0, 1, 1], [], []>} : vector<12x12xbf16>, vector<12x16xbf16>, vector<12x16xf32> -> vector<12x16xf32>
    %48 = arith.truncf %47 : vector<12x16xf32> to vector<12x16xbf16>
    %c0_49 = arith.constant 0 : index
    %c16_50 = arith.constant 16 : index
    %49 = vector.load %arg18[%c0_49, %c16_50] : memref<12x48xbf16, #tpu.memory_space<vmem>>, vector<12x16xbf16>
    tpu.vector_store %arg18[%c0_49, %c16_50], %48 {strides = array<i32>} : memref<12x48xbf16, #tpu.memory_space<vmem>>, vector<12x16xbf16>,
    %c0_51 = arith.constant 0 : index
    %c32_52 = arith.constant 32 : index
    %50 = vector.load %arg18[%c0_51, %c32_52] : memref<12x48xbf16, #tpu.memory_space<vmem>>, vector<12x16xbf16>
    tpu.vector_store %arg18[%c0_51, %c32_52], %33 {strides = array<i32>} : memref<12x48xbf16, #tpu.memory_space<vmem>>, vector<12x16xbf16>,
    %c0_53 = arith.constant 0 : index
    %c0_54 = arith.constant 0 : index
    %51 = vector.load %arg18[%c0_53, %c0_54] : memref<12x48xbf16, #tpu.memory_space<vmem>>, vector<12x48xbf16>
    %c0_55 = arith.constant 0 : index
    %c0_56 = arith.constant 0 : index
    %52 = vector.load %arg10[%c0_55, %c0_56] : memref<48x384xbf16, #tpu.memory_space<vmem>>, vector<48x384xbf16>
    %cst_57 = arith.constant dense<0.000000e+00> : vector<12x384xf32>
    %53 = tpu.matmul %51, %52, %cst_57 {dimension_numbers = #tpu.dot_dimension_numbers<[1], [0], [0], [1], [0, 0, 1, 1], [], []>} : vector<12x48xbf16>, vector<48x384xbf16>, vector<12x384xf32> -> vector<12x384xf32>
    %c0_58 = arith.constant 0 : index
    %c0_59 = arith.constant 0 : index
    %54 = vector.load %arg12[%c0_58, %c0_59] : memref<1x384xf32, #tpu.memory_space<vmem>>, vector<1x384xf32>
    %55 = vector.broadcast %54 : vector<1x384xf32> to vector<12x384xf32>
    %56 = arith.addf %53, %55 : vector<12x384xf32>
    %cst_60 = arith.constant dense<0xFF800000> : vector<8xf32>
    %57 = vector.multi_reduction <maximumf>, %43, %cst_60 [1] : vector<8x384xf32> to vector<8xf32>
    %58 = vector.shape_cast %57 : vector<8xf32> to vector<8x1xf32>
    %59 = vector.broadcast %58 : vector<8x1xf32> to vector<8x384xf32>
    %60 = arith.subf %43, %59 : vector<8x384xf32>
    %61 = math.exp %60 : vector<8x384xf32>
    %cst_61 = arith.constant dense<0.000000e+00> : vector<8xf32>
    %62 = vector.multi_reduction <add>, %61, %cst_61 [1] : vector<8x384xf32> to vector<8xf32>
    %63 = vector.shape_cast %62 : vector<8xf32> to vector<8x1xf32>
    %64 = math.log %63 : vector<8x1xf32>
    %65 = vector.broadcast %64 : vector<8x1xf32> to vector<8x384xf32>
    %66 = arith.subf %60, %65 : vector<8x384xf32>
    %c0_62 = arith.constant 0 : index
    %c0_63 = arith.constant 0 : index
    %67 = vector.load %arg13[%c0_62, %c0_63] : memref<8x384xf32, #tpu.memory_space<vmem>>, vector<8x384xf32>
    tpu.vector_store %arg13[%c0_62, %c0_63], %66 {strides = array<i32>} : memref<8x384xf32, #tpu.memory_space<vmem>>, vector<8x384xf32>,
    %cst_64 = arith.constant dense<0xFF800000> : vector<12xf32>
    %68 = vector.multi_reduction <maximumf>, %56, %cst_64 [1] : vector<12x384xf32> to vector<12xf32>
    %69 = vector.shape_cast %68 : vector<12xf32> to vector<12x1xf32>
    %70 = vector.broadcast %69 : vector<12x1xf32> to vector<12x384xf32>
    %71 = arith.subf %56, %70 : vector<12x384xf32>
    %72 = math.exp %71 : vector<12x384xf32>
    %cst_65 = arith.constant dense<0.000000e+00> : vector<12xf32>
    %73 = vector.multi_reduction <add>, %72, %cst_65 [1] : vector<12x384xf32> to vector<12xf32>
    %74 = vector.shape_cast %73 : vector<12xf32> to vector<12x1xf32>
    %75 = math.log %74 : vector<12x1xf32>
    %76 = vector.broadcast %75 : vector<12x1xf32> to vector<12x384xf32>
    %77 = arith.subf %71, %76 : vector<12x384xf32>
    %c0_66 = arith.constant 0 : index
    %c0_67 = arith.constant 0 : index
    %78 = vector.load %arg14[%c0_66, %c0_67] : memref<12x384xf32, #tpu.memory_space<vmem>>, vector<12x384xf32>
    tpu.vector_store %arg14[%c0_66, %c0_67], %77 {strides = array<i32>} : memref<12x384xf32, #tpu.memory_space<vmem>>, vector<12x384xf32>,
    return
  }
}

</mosaic_0001>

<llo_original>
// kernel: tpu_custom_call.1
$region0: #{tpu_custom_call.1}
  #allocation0 [shape = 'u32[]', space=smem, size = 0x4, offset = 0x4, fixed_abs, tag = 'smem constant byte address 0x4 - core index']
  #allocation1 [shape = 'u32[72,128]{1,0:T(1,128)}', space=vmem, size = 0x9000, scoped, tag = 'internal scratch']
  #allocation2 [shape = 'bf16[8,56]{1,0:T(8,128)(2,1)}', space=vmem, size = 0x800, scoped, tag = 'scratch operand']
  #allocation3 [shape = 'bf16[12,80]{1,0:T(8,128)(2,1)}', space=vmem, size = 0x1000, scoped, tag = 'scratch operand']
  #allocation4 [shape = 'bf16[8,32]{1,0:T(8,128)(2,1)}', space=vmem, size = 0x800, scoped, tag = 'scratch operand']
  #allocation5 [shape = 'bf16[12,48]{1,0:T(8,128)(2,1)}', space=vmem, size = 0x1000, scoped, tag = 'scratch operand']
  %s0 = inlined_call_operand.hbm [shape: bf16[8,32], index: 0, kind: input, shape index: {}]
  %s1 = inlined_call_operand.vmem [shape: bf16[12,24], index: 1, kind: input, shape index: {}]
  %s2 = inlined_call_operand.vmem [shape: bf16[12,8], index: 2, kind: input, shape index: {}]
  %s3 = inlined_call_operand.hbm [shape: bf16[12,12], index: 3, kind: input, shape index: {}]
  %s4 = inlined_call_operand.hbm [shape: bf16[8,12], index: 4, kind: input, shape index: {}]
  %s5 = inlined_call_operand.vmem [shape: bf16[56,16], index: 5, kind: input, shape index: {}]
  %s6 = inlined_call_operand.vmem [shape: bf16[80,16], index: 6, kind: input, shape index: {}]
  %s7 = inlined_call_operand.vmem [shape: f32[1,16], index: 7, kind: input, shape index: {}]
  %s8 = inlined_call_operand.hbm [shape: f32[1,16], index: 8, kind: input, shape index: {}]
  %s9 = inlined_call_operand.hbm [shape: bf16[32,384], index: 9, kind: input, shape index: {}]
  %s10 = inlined_call_operand.vmem [shape: bf16[48,384], index: 10, kind: input, shape index: {}]
  %s11 = inlined_call_operand.vmem [shape: f32[1,384], index: 11, kind: input, shape index: {}]
  %s12 = inlined_call_operand.vmem [shape: f32[1,384], index: 12, kind: input, shape index: {}]
  %s13 = inlined_call_operand.hbm [shape: f32[8,384], index: 13, kind: output, shape index: {0}]
  %s14 = inlined_call_operand.hbm [shape: f32[12,384], index: 14, kind: output, shape index: {1}]
  %15 = xla_tuple %s13, %s14
  %s16 = sld [smem:[#allocation0]]
  $region90: #{tpu_custom_call.1} parent=0
    _
  %s18 = ssub.s32 1, %s16
  %s19 = scalar_select 0, %s18, %s16
  $region1: #{tpu_custom_call.1} parent=0
    #allocation6 [shape = 'u8[2048]{0}', space=vmem, size = 0x800, scoped, tag = 'input window, operand 0, single buffered']
    #allocation7 [shape = 's32[1]{0}', space=sflag, size = 0x4, scoped, tag = 'scoped memory for tpu_custom_call.1']
    #allocation8 [shape = 's32[1]{0}', space=sflag, size = 0x4, scoped, tag = 'scoped memory for tpu_custom_call.1']
    #allocation9 [shape = 'u8[4096]{0}', space=vmem, size = 0x1000, scoped, tag = 'input window, operand 3, single buffered']
    #allocation10 [shape = 's32[1]{0}', space=sflag, size = 0x4, scoped, tag = 'scoped memory for tpu_custom_call.1']
    #allocation11 [shape = 'u8[2048]{0}', space=vmem, size = 0x800, scoped, tag = 'input window, operand 4, single buffered']
    #allocation12 [shape = 'u8[512]{0}', space=vmem, size = 0x400, scoped, tag = 'input window, operand 8, single buffered']
    #allocation13 [shape = 's32[1]{0}', space=sflag, size = 0x4, scoped, tag = 'scoped memory for tpu_custom_call.1']
    #allocation14 [shape = 'u8[24576]{0}', space=vmem, size = 0x6000, scoped, tag = 'input window, operand 9, single buffered']
    #allocation15 [shape = 'u8[12288]{0}', space=vmem, size = 0x3000, scoped, tag = 'output window, operand 0, single buffered']
    #allocation16 [shape = 'u8[24576]{0}', space=vmem, size = 0x6000, scoped, tag = 'output window, operand 1, single buffered']
    #allocation17 [shape = 's32[1]{0}', space=sflag, size = 0x4, scoped, tag = 'scoped memory for tpu_custom_call.1']
    %20 = vsyncpa [#allocation7], 0
    %21 = vsyncpa [#allocation10], 0
    %22 = vsyncpa [#allocation13], 0
    %23 = vsyncpa [#allocation8], 0
    %24 = vsyncpa [#allocation17], 0
    // Predicated region
    $region2: #{tpu_custom_call.1} parent=1 // pred_check
      _
    $region3: #{tpu_custom_call.1} parent=1 // pred_check_branch
      %26 = sbr.rel (0) target = $region5
    $region4: #{tpu_custom_call.1} parent=1 // pred_region
      %28 = vsyncadd [#allocation7], 0
      %s30 = sshll.u32 %s0, 4
      %s31 = int_to_ptr.hbm [resolvable:$true] %s30
      %s32 = sshll.u32 [#allocation6], 4
      %s33 = int_to_ptr.vmem [resolvable:$true] %s32
      %35 = dma.hbm_to_vmem [thread:$0]  %s31, 64, %s33, [#allocation7]
    $region5: #{tpu_custom_call.1} parent=1 // pred_fallthru
      _
    // Predicated region
    $region6: #{tpu_custom_call.1} parent=1 // pred_check
      _
    $region7: #{tpu_custom_call.1} parent=1 // pred_check_branch
      %37 = sbr.rel (0) target = $region9
    $region8: #{tpu_custom_call.1} parent=1 // pred_region
      _
    $region9: #{tpu_custom_call.1} parent=1 // pred_fallthru
      _
    // Predicated region
    $region10: #{tpu_custom_call.1} parent=1 // pred_check
      _
    $region11: #{tpu_custom_call.1} parent=1 // pred_check_branch
      %39 = sbr.rel (0) target = $region13
    $region12: #{tpu_custom_call.1} parent=1 // pred_region
      _
    $region13: #{tpu_custom_call.1} parent=1 // pred_fallthru
      _
    // Predicated region
    $region14: #{tpu_custom_call.1} parent=1 // pred_check
      _
    $region15: #{tpu_custom_call.1} parent=1 // pred_check_branch
      %41 = sbr.rel (0) target = $region17
    $region16: #{tpu_custom_call.1} parent=1 // pred_region
      %43 = vsyncadd [#allocation10], 0
      %s44 = sshll.u32 %s3, 4
      %s45 = int_to_ptr.hbm [resolvable:$true] %s44
      %s46 = sshll.u32 [#allocation9], 4
      %s47 = int_to_ptr.vmem [resolvable:$true] %s46
      %52 = dma.hbm_to_vmem [thread:$0]  %s45, 128, %s47, [#allocation10], 64, 64, 4
    $region17: #{tpu_custom_call.1} parent=1 // pred_fallthru
      _
    // Predicated region
    $region18: #{tpu_custom_call.1} parent=1 // pred_check
      _
    $region19: #{tpu_custom_call.1} parent=1 // pred_check_branch
      %54 = sbr.rel (0) target = $region21
    $region20: #{tpu_custom_call.1} parent=1 // pred_region
      %56 = vsyncadd [#allocation10], 0
      %s58 = sshll.u32 %s4, 4
      %s59 = int_to_ptr.hbm [resolvable:$true] %s58
      %s60 = sshll.u32 [#allocation11], 4
      %s61 = int_to_ptr.vmem [resolvable:$true] %s60
      %63 = dma.hbm_to_vmem [thread:$0]  %s59, 64, %s61, [#allocation10]
    $region21: #{tpu_custom_call.1} parent=1 // pred_fallthru
      _
    // Predicated region
    $region22: #{tpu_custom_call.1} parent=1 // pred_check
      _
    $region23: #{tpu_custom_call.1} parent=1 // pred_check_branch
      %65 = sbr.rel (0) target = $region25
    $region24: #{tpu_custom_call.1} parent=1 // pred_region
      _
    $region25: #{tpu_custom_call.1} parent=1 // pred_fallthru
      _
    // Predicated region
    $region26: #{tpu_custom_call.1} parent=1 // pred_check
      _
    $region27: #{tpu_custom_call.1} parent=1 // pred_check_branch
      %67 = sbr.rel (0) target = $region29
    $region28: #{tpu_custom_call.1} parent=1 // pred_region
      _
    $region29: #{tpu_custom_call.1} parent=1 // pred_fallthru
      _
    // Predicated region
    $region30: #{tpu_custom_call.1} parent=1 // pred_check
      _
    $region31: #{tpu_custom_call.1} parent=1 // pred_check_branch
      %69 = sbr.rel (0) target = $region33
    $region32: #{tpu_custom_call.1} parent=1 // pred_region
      _
    $region33: #{tpu_custom_call.1} parent=1 // pred_fallthru
      _
    // Predicated region
    $region34: #{tpu_custom_call.1} parent=1 // pred_check
      _
    $region35: #{tpu_custom_call.1} parent=1 // pred_check_branch
      %71 = sbr.rel (0) target = $region37
    $region36: #{tpu_custom_call.1} parent=1 // pred_region
      %73 = vsyncadd [#allocation13], 0
      %s75 = sshll.u32 %s8, 4
      %s76 = int_to_ptr.hbm [resolvable:$true] %s75
      %s77 = sshll.u32 [#allocation12], 4
      %s78 = int_to_ptr.vmem [resolvable:$true] %s77
      %80 = dma.hbm_to_vmem [thread:$0]  %s76, 16, %s78, [#allocation13]
    $region37: #{tpu_custom_call.1} parent=1 // pred_fallthru
      _
    // Predicated region
    $region38: #{tpu_custom_call.1} parent=1 // pred_check
      _
    $region39: #{tpu_custom_call.1} parent=1 // pred_check_branch
      %82 = sbr.rel (0) target = $region41
    $region40: #{tpu_custom_call.1} parent=1 // pred_region
      %84 = vsyncadd [#allocation13], 0
      %s85 = sshll.u32 %s9, 4
      %s86 = int_to_ptr.hbm [resolvable:$true] %s85
      %s87 = sshll.u32 [#allocation14], 4
      %s88 = int_to_ptr.vmem [resolvable:$true] %s87
      %93 = dma.hbm_to_vmem [thread:$0]  %s86, 768, %s88, [#allocation13], 192, 192, 12
    $region41: #{tpu_custom_call.1} parent=1 // pred_fallthru
      _
    // Predicated region
    $region42: #{tpu_custom_call.1} parent=1 // pred_check
      _
    $region43: #{tpu_custom_call.1} parent=1 // pred_check_branch
      %95 = sbr.rel (0) target = $region45
    $region44: #{tpu_custom_call.1} parent=1 // pred_region
      _
    $region45: #{tpu_custom_call.1} parent=1 // pred_fallthru
      _
    // Predicated region
    $region46: #{tpu_custom_call.1} parent=1 // pred_check
      _
    $region47: #{tpu_custom_call.1} parent=1 // pred_check_branch
      %97 = sbr.rel (0) target = $region49
    $region48: #{tpu_custom_call.1} parent=1 // pred_region
      _
    $region49: #{tpu_custom_call.1} parent=1 // pred_fallthru
      _
    // Predicated region
    $region50: #{tpu_custom_call.1} parent=1 // pred_check
      _
    $region51: #{tpu_custom_call.1} parent=1 // pred_check_branch
      %99 = sbr.rel (0) target = $region53
    $region52: #{tpu_custom_call.1} parent=1 // pred_region
      _
    $region53: #{tpu_custom_call.1} parent=1 // pred_fallthru
      _
    // Predicated region
    $region54: #{tpu_custom_call.1} parent=1 // pred_check
      _
    $region55: #{tpu_custom_call.1} parent=1 // pred_check_branch
      %101 = sbr.rel (0) target = $region57
    $region56: #{tpu_custom_call.1} parent=1 // pred_region
      %103 = dma.done [#allocation7], 64
    $region57: #{tpu_custom_call.1} parent=1 // pred_fallthru
      _
    // Predicated region
    $region58: #{tpu_custom_call.1} parent=1 // pred_check
      _
    $region59: #{tpu_custom_call.1} parent=1 // pred_check_branch
      %105 = sbr.rel (0) target = $region61
    $region60: #{tpu_custom_call.1} parent=1 // pred_region
      %107 = dma.done [#allocation10], 128
    $region61: #{tpu_custom_call.1} parent=1 // pred_fallthru
      _
    // Predicated region
    $region62: #{tpu_custom_call.1} parent=1 // pred_check
      _
    $region63: #{tpu_custom_call.1} parent=1 // pred_check_branch
      %109 = sbr.rel (0) target = $region65
    $region64: #{tpu_custom_call.1} parent=1 // pred_region
      %111 = dma.done [#allocation10], 64
    $region65: #{tpu_custom_call.1} parent=1 // pred_fallthru
      _
    // Predicated region
    $region66: #{tpu_custom_call.1} parent=1 // pred_check
      _
    $region67: #{tpu_custom_call.1} parent=1 // pred_check_branch
      %113 = sbr.rel (0) target = $region69
    $region68: #{tpu_custom_call.1} parent=1 // pred_region
      %115 = dma.done [#allocation13], 16
    $region69: #{tpu_custom_call.1} parent=1 // pred_fallthru
      _
    // Predicated region
    $region70: #{tpu_custom_call.1} parent=1 // pred_check
      _
    $region71: #{tpu_custom_call.1} parent=1 // pred_check_branch
      %117 = sbr.rel (0) target = $region73
    $region72: #{tpu_custom_call.1} parent=1 // pred_region
      %119 = dma.done [#allocation13], 768
    $region73: #{tpu_custom_call.1} parent=1 // pred_fallthru
      _
    %v121 = vld [vmem:[#allocation6] sm:$0xf]
    %v122 = vld [vmem:[%s1] sm:$0xf]
    %v123 = vld [vmem:[%s1 + $0x4] sm:$0x3]
    %v124 = vld [vmem:[%s2] sm:$0xf]
    %v125 = vld [vmem:[%s2 + $0x4] sm:$0x3]
    %v126 = vld [vmem:[#allocation9] sm:$0xf]
    %v127 = vld [vmem:[#allocation9 + $0x4] sm:$0x3]
    %v128 = vld [vmem:[#allocation11] sm:$0xf]
    %v131 = vunpack.c.l.b16 %v122
    %v132 = vunpack.c.l.b16 %v123
    %v133 = vpack.c.b16 %v132, %v131
    %vm134 = vcmask 97280
    %v136 = vsel %vm134, %v128, 0
    %vm138 = vcmask 1045504
    %v140 = vsel %vm138, %v133, 0
    %142 = vmatpush.bf16.msra.mxu0 0
    %143 = vmatpush.bf16.msra.mxu0 0
    %144 = vmatpush.bf16.msra.mxu0 0
    %145 = vmatpush.bf16.msra.mxu0 0
    %146 = vmatpush.bf16.msra.mxu0 0
    %147 = vmatpush.bf16.msra.mxu0 0
    %148 = vmatpush.bf16.msra.mxu0 0
    %149 = vmatpush.bf16.msra.mxu0 %v140
    %150 = vmatmul.bf16.gmra.mxu0 %v136
    %v151 = vpop.f32.mrf.mxu0
    %v152 = vadd.f32 0.0, %v151
    %v153 = vpop.f32.mrf.mxu0
    %154 = vdwg.mxu0
    %v155 = vpack.c.bf16 %v152, %v152
    %vm156 = vcmask 191488
    %157 = vst.msk [vmem:[#allocation2] sm:$0xf] %vm156, %v155
    %159 = vrot.lane.b32.xlu0 %v121, 24
    %v160 = vpop.permute.xlu0 %159
    %vm162 = vcmask 453824
    %163 = vst.msk [vmem:[#allocation2] sm:$0xf] %vm162, %v160
    %v164 = vld [vmem:[#allocation2] sm:$0xf]
    %v165 = vld [vmem:[%s5] sm:$0xf]
    %v166 = vld [vmem:[%s5 + $0x4] sm:$0xf]
    %v167 = vld [vmem:[%s5 + $0x8] sm:$0xf]
    %v168 = vld [vmem:[%s5 + $0xc] sm:$0xf]
    %v169 = vld [vmem:[%s5 + $0x10] sm:$0xf]
    %v170 = vld [vmem:[%s5 + $0x14] sm:$0xf]
    %v171 = vld [vmem:[%s5 + $0x18] sm:$0xf]
    %v172 = vld [vmem:[%s7] sm:$0x1]
    %v174 = vperm.slane %v172, 0
    %v183 = vunpack.c.l.b16 %v165
    %v184 = vunpack.c.l.b16 %v166
    %v185 = vunpack.c.l.b16 %v167
    %v186 = vunpack.c.l.b16 %v168
    %v187 = vunpack.c.l.b16 %v169
    %v188 = vunpack.c.l.b16 %v170
    %v189 = vunpack.c.l.b16 %v171
    %v190 = vpack.c.b16 %v184, %v183
    %v191 = vpack.c.b16 %v186, %v185
    %v192 = vpack.c.b16 %v188, %v187
    %v193 = vpack.c.b16 %v189, %v189
    %vm197 = vcmask 457728
    %v199 = vsel %vm197, %v164, 0
    %vm201 = vcmask 1043456
    %v203 = vsel %vm201, %v193, 0
    %205 = vmatpush.bf16.msra.mxu0 0
    %206 = vmatpush.bf16.msra.mxu0 0
    %207 = vmatpush.bf16.msra.mxu0 0
    %208 = vmatpush.bf16.msra.mxu0 0
    %209 = vmatpush.bf16.msra.mxu0 %v203
    %210 = vmatpush.bf16.msra.mxu0 %v192
    %211 = vmatpush.bf16.msra.mxu0 %v191
    %212 = vmatpush.bf16.msra.mxu0 %v190
    %213 = vmatmul.bf16.gmra.mxu0 %v199
    %v214 = vpop.f32.mrf.mxu0
    %v215 = vadd.f32 %v174, %v214
    %v216 = vpop.f32.mrf.mxu0
    %217 = vdwg.mxu0
    %v220 = vunpack.c.l.b16 %v124
    %v221 = vunpack.c.l.b16 %v125
    %v222 = vpack.c.b16 %v221, %v220
    %vm223 = vcmask 64512
    %v225 = vsel %vm223, %v222, 0
    %v228 = vsel %vm201, %v121, 0
    %230 = vmatpush.bf16.msra.mxu0 0
    %231 = vmatpush.bf16.msra.mxu0 0
    %232 = vmatpush.bf16.msra.mxu0 0
    %233 = vmatpush.bf16.msra.mxu0 0
    %234 = vmatpush.bf16.msra.mxu0 0
    %235 = vmatpush.bf16.msra.mxu0 0
    %236 = vmatpush.bf16.msra.mxu0 0
    %237 = vmatpush.bf16.msra.mxu0 %v228
    %238 = vmatmul.bf16.gmra.mxu0 %v225
    %v239 = vpop.f32.mrf.mxu0
    %v240 = vadd.f32 0.0, %v239
    %v241 = vpop.f32.mrf.mxu0
    %v242 = vadd.f32 0.0, %v241
    %243 = vdwg.mxu0
    %v244 = vpack.c.bf16 %v240, %v240
    %v245 = vpack.c.bf16 %v242, %v242
    %vm246 = vcmask 257024
    %247 = vst.msk [vmem:[#allocation3] sm:$0xf] %vm246, %v244
    %vm248 = vcmask 254976
    %249 = vst.msk [vmem:[#allocation3 + $0x4] sm:$0x3] %vm248, %v245
    %v252 = vunpack.c.l.b16 %v126
    %v253 = vunpack.c.l.b16 %v127
    %v254 = vpack.c.b16 %v253, %v252
    %v256 = vsel %vm134, %v254, 0
    %258 = vmatpush.bf16.msra.mxu0 0
    %259 = vmatpush.bf16.msra.mxu0 0
    %260 = vmatpush.bf16.msra.mxu0 0
    %261 = vmatpush.bf16.msra.mxu0 0
    %262 = vmatpush.bf16.msra.mxu0 0
    %263 = vmatpush.bf16.msra.mxu0 0
    %264 = vmatpush.bf16.msra.mxu0 0
    %265 = vmatpush.bf16.msra.mxu0 %v140
    %266 = vmatmul.bf16.gmra.mxu0 %v256
    %v267 = vpop.f32.mrf.mxu0
    %v268 = vadd.f32 0.0, %v267
    %v269 = vpop.f32.mrf.mxu0
    %v270 = vadd.f32 0.0, %v269
    %271 = vdwg.mxu0
    %v272 = vpack.c.bf16 %v268, %v268
    %v273 = vpack.c.bf16 %v270, %v270
    %276 = vrot.lane.b32.xlu0 %v272, 32
    %v277 = vpop.permute.xlu0 %276
    %278 = vrot.lane.b32.xlu0 %v273, 32
    %v279 = vpop.permute.xlu0 %278
    %vm282 = vcmask 453888
    %283 = vst.msk [vmem:[#allocation3] sm:$0xf] %vm282, %v277
    %vm284 = vcmask 451840
    %285 = vst.msk [vmem:[#allocation3 + $0x4] sm:$0x3] %vm284, %v279
    %286 = vrot.lane.b32.xlu0 %v122, 56
    %v287 = vpop.permute.xlu0 %286
    %288 = vrot.lane.b32.xlu0 %v123, 56
    %v289 = vpop.permute.xlu0 %288
    %vm292 = vcmask 650688
    %293 = vst.msk [vmem:[#allocation3] sm:$0xf] %vm292, %v287
    %vm294 = vcmask 648640
    %295 = vst.msk [vmem:[#allocation3 + $0x4] sm:$0x3] %vm294, %v289
    %v296 = vld [vmem:[#allocation3] sm:$0xf]
    %v297 = vld [vmem:[#allocation3 + $0x4] sm:$0x3]
    %v298 = vld [vmem:[%s6] sm:$0xf]
    %v299 = vld [vmem:[%s6 + $0x4] sm:$0xf]
    %v300 = vld [vmem:[%s6 + $0x8] sm:$0xf]
    %v301 = vld [vmem:[%s6 + $0xc] sm:$0xf]
    %v302 = vld [vmem:[%s6 + $0x10] sm:$0xf]
    %v303 = vld [vmem:[%s6 + $0x14] sm:$0xf]
    %v304 = vld [vmem:[%s6 + $0x18] sm:$0xf]
    %v305 = vld [vmem:[%s6 + $0x1c] sm:$0xf]
    %v306 = vld [vmem:[%s6 + $0x20] sm:$0xf]
    %v307 = vld [vmem:[%s6 + $0x24] sm:$0xf]
    %v308 = vld [vmem:[#allocation12] sm:$0x1]
    %v310 = vperm.slane %v308, 0
    %v314 = vunpack.c.l.b16 %v296
    %v315 = vunpack.c.l.b16 %v297
    %v316 = vpack.c.b16 %v315, %v314
    %v327 = vunpack.c.l.b16 %v298
    %v328 = vunpack.c.l.b16 %v299
    %v329 = vunpack.c.l.b16 %v300
    %v330 = vunpack.c.l.b16 %v301
    %v331 = vunpack.c.l.b16 %v302
    %v332 = vunpack.c.l.b16 %v303
    %v333 = vunpack.c.l.b16 %v304
    %v334 = vunpack.c.l.b16 %v305
    %v335 = vunpack.c.l.b16 %v306
    %v336 = vunpack.c.l.b16 %v307
    %v337 = vpack.c.b16 %v328, %v327
    %v338 = vpack.c.b16 %v330, %v329
    %v339 = vpack.c.b16 %v332, %v331
    %v340 = vpack.c.b16 %v334, %v333
    %v341 = vpack.c.b16 %v336, %v335
    %vm347 = vcmask 654336
    %v349 = vsel %vm347, %v316, 0
    %351 = vmatpush.bf16.msra.mxu0 0
    %352 = vmatpush.bf16.msra.mxu0 0
    %353 = vmatpush.bf16.msra.mxu0 0
    %354 = vmatpush.bf16.msra.mxu0 %v341
    %355 = vmatpush.bf16.msra.mxu0 %v340
    %356 = vmatpush.bf16.msra.mxu0 %v339
    %357 = vmatpush.bf16.msra.mxu0 %v338
    %358 = vmatpush.bf16.msra.mxu0 %v337
    %359 = vmatmul.bf16.gmra.mxu0 %v349
    %v360 = vpop.f32.mrf.mxu0
    %v361 = vadd.f32 %v310, %v360
    %v362 = vpop.f32.mrf.mxu0
    %v363 = vadd.f32 %v310, %v362
    %364 = vdwg.mxu0
    %v365 = vmax.f32 %v215, 0.0
    %v366 = vpack.c.bf16 %v365, %v365
    %v367 = vmax.f32 %v361, 0.0
    %v368 = vmax.f32 %v363, 0.0
    %v369 = vpack.c.bf16 %v367, %v367
    %v370 = vpack.c.bf16 %v368, %v368
    %v373 = vunpack.c.l.b16 %v369
    %v374 = vunpack.c.l.b16 %v370
    %v375 = vpack.c.b16 %v374, %v373
    %v377 = vsel %vm138, %v375, 0
    %379 = vmatpush.bf16.msra.mxu0 0
    %380 = vmatpush.bf16.msra.mxu0 0
    %381 = vmatpush.bf16.msra.mxu0 0
    %382 = vmatpush.bf16.msra.mxu0 0
    %383 = vmatpush.bf16.msra.mxu0 0
    %384 = vmatpush.bf16.msra.mxu0 0
    %385 = vmatpush.bf16.msra.mxu0 0
    %386 = vmatpush.bf16.msra.mxu0 %v377
    %387 = vmatmul.bf16.gmra.mxu0 %v136
    %v388 = vpop.f32.mrf.mxu0
    %v389 = vadd.f32 0.0, %v388
    %v390 = vpop.f32.mrf.mxu0
    %391 = vdwg.mxu0
    %v392 = vpack.c.bf16 %v389, %v389
    %vm393 = vcmask 125952
    %394 = vst.msk [vmem:[#allocation4] sm:$0xf] %vm393, %v392
    %396 = vrot.lane.b32.xlu0 %v366, 16
    %v397 = vpop.permute.xlu0 %396
    %vm399 = vcmask 257152
    %400 = vst.msk [vmem:[#allocation4] sm:$0xf] %vm399, %v397
    %v401 = vld [vmem:[#allocation4] sm:$0xf]
    %v402 = vld [vmem:[#allocation14] sm:$0xff]
    %v403 = vld [vmem:[#allocation14 + $0x8] sm:$0xf]
    %v404 = vld [vmem:[#allocation14 + $0xc] sm:$0xff]
    %v405 = vld [vmem:[#allocation14 + $0x14] sm:$0xf]
    %v406 = vld [vmem:[#allocation14 + $0x18] sm:$0xff]
    %v407 = vld [vmem:[#allocation14 + $0x20] sm:$0xf]
    %v408 = vld [vmem:[#allocation14 + $0x24] sm:$0xff]
    %v409 = vld [vmem:[#allocation14 + $0x2c] sm:$0xf]
    %v410 = vld [vmem:[%s11] sm:$0x7]
    %v412 = vperm.slane %v410, 0
    %v413 = vperm.slane %v410, 1
    %v414 = vperm.slane %v410, 2
    %v426 = vunpack.c.l.b16 %v402
    %v427 = vunpack.c.h.b16 %v402
    %v428 = vunpack.c.l.b16 %v403
    %v429 = vunpack.c.l.b16 %v404
    %v430 = vunpack.c.h.b16 %v404
    %v431 = vunpack.c.l.b16 %v405
    %v432 = vunpack.c.l.b16 %v406
    %v433 = vunpack.c.h.b16 %v406
    %v434 = vunpack.c.l.b16 %v407
    %v435 = vunpack.c.l.b16 %v408
    %v436 = vunpack.c.h.b16 %v408
    %v437 = vunpack.c.l.b16 %v409
    %v438 = vpack.c.b16 %v429, %v426
    %v439 = vpack.c.b16 %v430, %v427
    %v440 = vpack.c.b16 %v431, %v428
    %v441 = vpack.c.b16 %v435, %v432
    %v442 = vpack.c.b16 %v436, %v433
    %v443 = vpack.c.b16 %v437, %v434
    %vm450 = vcmask 261120
    %v452 = vsel %vm450, %v401, 0
    %454 = vmatpush.bf16.msra.mxu0 0
    %455 = vmatpush.bf16.msra.mxu0 0
    %456 = vmatpush.bf16.msra.mxu0 0
    %457 = vmatpush.bf16.msra.mxu0 0
    %458 = vmatpush.bf16.msra.mxu0 0
    %459 = vmatpush.bf16.msra.mxu0 0
    %460 = vmatpush.bf16.msra.mxu0 %v441
    %461 = vmatpush.bf16.msra.mxu0 %v438
    %462 = vmatmul.bf16.gmra.mxu0 %v452
    %v463 = vpop.f32.mrf.mxu0
    %v464 = vadd.f32 %v412, %v463
    %v465 = vpop.f32.mrf.mxu0
    %466 = vdwg.mxu0
    %467 = vmatpush.bf16.msra.mxu0 0
    %468 = vmatpush.bf16.msra.mxu0 0
    %469 = vmatpush.bf16.msra.mxu0 0
    %470 = vmatpush.bf16.msra.mxu0 0
    %471 = vmatpush.bf16.msra.mxu0 0
    %472 = vmatpush.bf16.msra.mxu0 0
    %473 = vmatpush.bf16.msra.mxu0 %v442
    %474 = vmatpush.bf16.msra.mxu0 %v439
    %475 = vmatmul.bf16.gmra.mxu0 %v452
    %v476 = vpop.f32.mrf.mxu0
    %v477 = vadd.f32 %v413, %v476
    %v478 = vpop.f32.mrf.mxu0
    %479 = vdwg.mxu0
    %480 = vmatpush.bf16.msra.mxu0 0
    %481 = vmatpush.bf16.msra.mxu0 0
    %482 = vmatpush.bf16.msra.mxu0 0
    %483 = vmatpush.bf16.msra.mxu0 0
    %484 = vmatpush.bf16.msra.mxu0 0
    %485 = vmatpush.bf16.msra.mxu0 0
    %486 = vmatpush.bf16.msra.mxu0 %v443
    %487 = vmatpush.bf16.msra.mxu0 %v440
    %488 = vmatmul.bf16.gmra.mxu0 %v452
    %v489 = vpop.f32.mrf.mxu0
    %v490 = vadd.f32 %v414, %v489
    %v491 = vpop.f32.mrf.mxu0
    %492 = vdwg.mxu0
    %v494 = vsel %vm201, %v366, 0
    %496 = vmatpush.bf16.msra.mxu0 0
    %497 = vmatpush.bf16.msra.mxu0 0
    %498 = vmatpush.bf16.msra.mxu0 0
    %499 = vmatpush.bf16.msra.mxu0 0
    %500 = vmatpush.bf16.msra.mxu0 0
    %501 = vmatpush.bf16.msra.mxu0 0
    %502 = vmatpush.bf16.msra.mxu0 0
    %503 = vmatpush.bf16.msra.mxu0 %v494
    %504 = vmatmul.bf16.gmra.mxu0 %v225
    %v505 = vpop.f32.mrf.mxu0
    %v506 = vadd.f32 0.0, %v505
    %v507 = vpop.f32.mrf.mxu0
    %v508 = vadd.f32 0.0, %v507
    %509 = vdwg.mxu0
    %v510 = vpack.c.bf16 %v506, %v506
    %v511 = vpack.c.bf16 %v508, %v508
    %512 = vst.msk [vmem:[#allocation5] sm:$0xf] %vm393, %v510
    %vm513 = vcmask 123904
    %514 = vst.msk [vmem:[#allocation5 + $0x4] sm:$0x3] %vm513, %v511
    %515 = vmatpush.bf16.msra.mxu0 0
    %516 = vmatpush.bf16.msra.mxu0 0
    %517 = vmatpush.bf16.msra.mxu0 0
    %518 = vmatpush.bf16.msra.mxu0 0
    %519 = vmatpush.bf16.msra.mxu0 0
    %520 = vmatpush.bf16.msra.mxu0 0
    %521 = vmatpush.bf16.msra.mxu0 0
    %522 = vmatpush.bf16.msra.mxu0 %v377
    %523 = vmatmul.bf16.gmra.mxu0 %v256
    %v524 = vpop.f32.mrf.mxu0
    %v525 = vadd.f32 0.0, %v524
    %v526 = vpop.f32.mrf.mxu0
    %v527 = vadd.f32 0.0, %v526
    %528 = vdwg.mxu0
    %v529 = vpack.c.bf16 %v525, %v525
    %v530 = vpack.c.bf16 %v527, %v527
    %533 = vrot.lane.b32.xlu0 %v529, 16
    %v534 = vpop.permute.xlu0 %533
    %535 = vrot.lane.b32.xlu0 %v530, 16
    %v536 = vpop.permute.xlu0 %535
    %539 = vst.msk [vmem:[#allocation5] sm:$0xf] %vm399, %v534
    %vm540 = vcmask 255104
    %541 = vst.msk [vmem:[#allocation5 + $0x4] sm:$0x3] %vm540, %v536
    %542 = vrot.lane.b32.xlu0 %v369, 32
    %v543 = vpop.permute.xlu0 %542
    %544 = vrot.lane.b32.xlu0 %v370, 32
    %v545 = vpop.permute.xlu0 %544
    %vm548 = vcmask 388352
    %549 = vst.msk [vmem:[#allocation5] sm:$0xf] %vm548, %v543
    %vm550 = vcmask 386304
    %551 = vst.msk [vmem:[#allocation5 + $0x4] sm:$0x3] %vm550, %v545
    %v552 = vld [vmem:[#allocation5] sm:$0xf]
    %v553 = vld [vmem:[#allocation5 + $0x4] sm:$0x3]
    %v554 = vld [vmem:[%s10] sm:$0xff]
    %v555 = vld [vmem:[%s10 + $0x8] sm:$0xf]
    %v556 = vld [vmem:[%s10 + $0xc] sm:$0xff]
    %v557 = vld [vmem:[%s10 + $0x14] sm:$0xf]
    %v558 = vld [vmem:[%s10 + $0x18] sm:$0xff]
    %v559 = vld [vmem:[%s10 + $0x20] sm:$0xf]
    %v560 = vld [vmem:[%s10 + $0x24] sm:$0xff]
    %v561 = vld [vmem:[%s10 + $0x2c] sm:$0xf]
    %v562 = vld [vmem:[%s10 + $0x30] sm:$0xff]
    %v563 = vld [vmem:[%s10 + $0x38] sm:$0xf]
    %v564 = vld [vmem:[%s10 + $0x3c] sm:$0xff]
    %v565 = vld [vmem:[%s10 + $0x44] sm:$0xf]
    %v566 = vld [vmem:[%s12] sm:$0x7]
    %v568 = vperm.slane %v566, 0
    %v569 = vperm.slane %v566, 1
    %v570 = vperm.slane %v566, 2
    %v576 = vunpack.c.l.b16 %v552
    %v577 = vunpack.c.l.b16 %v553
    %v578 = vpack.c.b16 %v577, %v576
    %v591 = vunpack.c.l.b16 %v554
    %v592 = vunpack.c.h.b16 %v554
    %v593 = vunpack.c.l.b16 %v555
    %v594 = vunpack.c.l.b16 %v556
    %v595 = vunpack.c.h.b16 %v556
    %v596 = vunpack.c.l.b16 %v557
    %v597 = vunpack.c.l.b16 %v558
    %v598 = vunpack.c.h.b16 %v558
    %v599 = vunpack.c.l.b16 %v559
    %v600 = vunpack.c.l.b16 %v560
    %v601 = vunpack.c.h.b16 %v560
    %v602 = vunpack.c.l.b16 %v561
    %v603 = vunpack.c.l.b16 %v562
    %v604 = vunpack.c.h.b16 %v562
    %v605 = vunpack.c.l.b16 %v563
    %v606 = vunpack.c.l.b16 %v564
    %v607 = vunpack.c.h.b16 %v564
    %v608 = vunpack.c.l.b16 %v565
    %v609 = vpack.c.b16 %v594, %v591
    %v610 = vpack.c.b16 %v595, %v592
    %v611 = vpack.c.b16 %v596, %v593
    %v612 = vpack.c.b16 %v600, %v597
    %v613 = vpack.c.b16 %v601, %v598
    %v614 = vpack.c.b16 %v602, %v599
    %v615 = vpack.c.b16 %v606, %v603
    %v616 = vpack.c.b16 %v607, %v604
    %v617 = vpack.c.b16 %v608, %v605
    %vm627 = vcmask 392192
    %v629 = vsel %vm627, %v578, 0
    %631 = vmatpush.bf16.msra.mxu0 0
    %632 = vmatpush.bf16.msra.mxu0 0
    %633 = vmatpush.bf16.msra.mxu0 0
    %634 = vmatpush.bf16.msra.mxu0 0
    %635 = vmatpush.bf16.msra.mxu0 0
    %636 = vmatpush.bf16.msra.mxu0 %v615
    %637 = vmatpush.bf16.msra.mxu0 %v612
    %638 = vmatpush.bf16.msra.mxu0 %v609
    %639 = vmatmul.bf16.gmra.mxu0 %v629
    %v640 = vpop.f32.mrf.mxu0
    %v641 = vadd.f32 %v568, %v640
    %v642 = vpop.f32.mrf.mxu0
    %v643 = vadd.f32 %v568, %v642
    %644 = vdwg.mxu0
    %645 = vmatpush.bf16.msra.mxu0 0
    %646 = vmatpush.bf16.msra.mxu0 0
    %647 = vmatpush.bf16.msra.mxu0 0
    %648 = vmatpush.bf16.msra.mxu0 0
    %649 = vmatpush.bf16.msra.mxu0 0
    %650 = vmatpush.bf16.msra.mxu0 %v616
    %651 = vmatpush.bf16.msra.mxu0 %v613
    %652 = vmatpush.bf16.msra.mxu0 %v610
    %653 = vmatmul.bf16.gmra.mxu0 %v629
    %v654 = vpop.f32.mrf.mxu0
    %v655 = vadd.f32 %v569, %v654
    %v656 = vpop.f32.mrf.mxu0
    %v657 = vadd.f32 %v569, %v656
    %658 = vdwg.mxu0
    %659 = vmatpush.bf16.msra.mxu0 0
    %660 = vmatpush.bf16.msra.mxu0 0
    %661 = vmatpush.bf16.msra.mxu0 0
    %662 = vmatpush.bf16.msra.mxu0 0
    %663 = vmatpush.bf16.msra.mxu0 0
    %664 = vmatpush.bf16.msra.mxu0 %v617
    %665 = vmatpush.bf16.msra.mxu0 %v614
    %666 = vmatpush.bf16.msra.mxu0 %v611
    %667 = vmatmul.bf16.gmra.mxu0 %v629
    %v668 = vpop.f32.mrf.mxu0
    %v669 = vadd.f32 %v570, %v668
    %v670 = vpop.f32.mrf.mxu0
    %v671 = vadd.f32 %v570, %v670
    %672 = vdwg.mxu0
    %v673 = vmax.f32 %v464, %v477
    %v674 = vmax.f32 %v673, %v490
    %675 = vmax.xlane.f32.xlu0 %v674
    %v676 = vpop.xlane.xlu0 %675
    %v677 = vsub.f32 %v464, %v676
    %v678 = vsub.f32 %v477, %v676
    %v679 = vsub.f32 %v490, %v676
    %v680 = vmul.f32 %v677, 1.442695
    %v681 = vpow.pop %v680
    %v682 = vmul.f32 %v678, 1.442695
    %v683 = vpow.pop %v682
    %v684 = vmul.f32 %v679, 1.442695
    %v685 = vpow.pop %v684
    %v686 = vadd.f32 %v681, %v683
    %v687 = vadd.f32 %v686, %v685
    %688 = vadd.xlane.f32.xlu0 %v687
    %v689 = vpop.xlane.xlu0 %688
    %v690 = vlog2.pop %v689
    %v691 = vmul.f32 %v690, 0.6931472
    %v692 = vsub.f32 %v677, %v691
    %v693 = vsub.f32 %v678, %v691
    %v694 = vsub.f32 %v679, %v691
    %695 = vst [vmem:[#allocation15] sm:$0xff] %v692
    %696 = vst [vmem:[#allocation15 + $0x8] sm:$0xff] %v693
    %697 = vst [vmem:[#allocation15 + $0x10] sm:$0xff] %v694
    %v698 = vmax.f32 %v641, %v669
    %v699 = vmax.f32 %v698, %v655
    %700 = vmax.xlane.f32.xlu0 %v699
    %v701 = vpop.xlane.xlu0 %700
    %v702 = vsel %vm201, %v643, -inf
    %v703 = vsel %vm201, %v657, -inf
    %v704 = vsel %vm201, %v671, -inf
    %v705 = vmax.f32 %v702, %v704
    %v706 = vmax.f32 %v705, %v703
    %707 = vmax.xlane.f32.xlu0 %v706
    %v708 = vpop.xlane.xlu0 %707
    %v709 = vsub.f32 %v641, %v701
    %v710 = vsub.f32 %v655, %v701
    %v711 = vsub.f32 %v669, %v701
    %v712 = vsub.f32 %v643, %v708
    %v713 = vsub.f32 %v657, %v708
    %v714 = vsub.f32 %v671, %v708
    %v715 = vmul.f32 %v709, 1.442695
    %v716 = vpow.pop %v715
    %v717 = vmul.f32 %v710, 1.442695
    %v718 = vpow.pop %v717
    %v719 = vmul.f32 %v711, 1.442695
    %v720 = vpow.pop %v719
    %v721 = vmul.f32 %v712, 1.442695
    %v722 = vpow.pop %v721
    %v723 = vmul.f32 %v713, 1.442695
    %v724 = vpow.pop %v723
    %v725 = vmul.f32 %v714, 1.442695
    %v726 = vpow.pop %v725
    %v727 = vadd.f32 %v716, %v718
    %v728 = vadd.f32 %v727, %v720
    %729 = vadd.xlane.f32.xlu0 %v728
    %v730 = vpop.xlane.xlu0 %729
    %v731 = vsel %vm201, %v722, 0.0
    %v732 = vsel %vm201, %v724, 0.0
    %v733 = vadd.f32 %v731, %v732
    %v734 = vsel %vm201, %v726, 0.0
    %v735 = vadd.f32 %v733, %v734
    %736 = vadd.xlane.f32.xlu0 %v735
    %v737 = vpop.xlane.xlu0 %736
    %v738 = vlog2.pop %v730
    %v739 = vmul.f32 %v738, 0.6931472
    %v740 = vlog2.pop %v737
    %v741 = vmul.f32 %v740, 0.6931472
    %v742 = vsub.f32 %v709, %v739
    %v743 = vsub.f32 %v710, %v739
    %v744 = vsub.f32 %v711, %v739
    %v745 = vsub.f32 %v712, %v741
    %v746 = vsub.f32 %v713, %v741
    %v747 = vsub.f32 %v714, %v741
    %748 = vst [vmem:[#allocation16] sm:$0xff] %v742
    %749 = vst [vmem:[#allocation16 + $0x8] sm:$0xff] %v743
    %750 = vst [vmem:[#allocation16 + $0x10] sm:$0xff] %v744
    %751 = vst [vmem:[#allocation16 + $0x18] sm:$0xf] %v745
    %752 = vst [vmem:[#allocation16 + $0x20] sm:$0xf] %v746
    %753 = vst [vmem:[#allocation16 + $0x28] sm:$0xf] %v747
    // Predicated region
    $region74: #{tpu_custom_call.1} parent=1 // pred_check
      _
    $region75: #{tpu_custom_call.1} parent=1 // pred_check_branch
      %755 = sbr.rel (0) target = $region77
    $region76: #{tpu_custom_call.1} parent=1 // pred_region
      %757 = vsyncadd [#allocation8], 0
      %s759 = sshll.u32 [#allocation15], 4
      %s760 = int_to_ptr.vmem [resolvable:$true] %s759
      %s761 = sshll.u32 %s13, 4
      %s762 = int_to_ptr.hbm [resolvable:$true] %s761
      %764 = dma.vmem_to_hbm [thread:$0]  %s760, 384, %s762, [#allocation8]
    $region77: #{tpu_custom_call.1} parent=1 // pred_fallthru
      _
    // Predicated region
    $region78: #{tpu_custom_call.1} parent=1 // pred_check
      _
    $region79: #{tpu_custom_call.1} parent=1 // pred_check_branch
      %766 = sbr.rel (0) target = $region81
    $region80: #{tpu_custom_call.1} parent=1 // pred_region
      %768 = vsyncadd [#allocation17], 0
      %s769 = sshll.u32 [#allocation16], 4
      %s770 = int_to_ptr.vmem [resolvable:$true] %s769
      %s771 = sshll.u32 %s14, 4
      %s772 = int_to_ptr.hbm [resolvable:$true] %s771
      %777 = dma.vmem_to_hbm [thread:$0]  %s770, 768, %s772, [#allocation17], 384, 384, 24
    $region81: #{tpu_custom_call.1} parent=1 // pred_fallthru
      _
    // Predicated region
    $region82: #{tpu_custom_call.1} parent=1 // pred_check
      _
    $region83: #{tpu_custom_call.1} parent=1 // pred_check_branch
      %779 = sbr.rel (0) target = $region85
    $region84: #{tpu_custom_call.1} parent=1 // pred_region
      %781 = dma.done [#allocation8], 384
    $region85: #{tpu_custom_call.1} parent=1 // pred_fallthru
      _
    // Predicated region
    $region86: #{tpu_custom_call.1} parent=1 // pred_check
      _
    $region87: #{tpu_custom_call.1} parent=1 // pred_check_branch
      %783 = sbr.rel (0) target = $region89
    $region88: #{tpu_custom_call.1} parent=1 // pred_region
      %785 = dma.done [#allocation17], 768
    $region89: #{tpu_custom_call.1} parent=1 // pred_fallthru
      _
    %786 = vsyncpa [#allocation7], 1
    %787 = vsyncpa [#allocation10], 1
    %788 = vsyncpa [#allocation13], 1
    %789 = vsyncpa [#allocation8], 1
    %790 = vsyncpa [#allocation17], 1

</llo_original>
